<compile_context>
chip_gen: v7x
topology: tpu7x:2x2x1
jax: 0.10.0
libtpu: 0.0.40
codegen_flags: <defaults>
</compile_context>

<pallas_src>
import numpy as np
import jax
import jax.numpy as jnp
from jax.experimental import pallas as pl
from jax.experimental.pallas import tpu as pltpu


# ----------------------------------------------------------------------------
# Parameter setup (glue, plain JAX) -- mirrors ConcatUnshuffle.__init__
# ----------------------------------------------------------------------------
def build_3d_sincos_position_embedding(grid_size, embed_dim, num_tokens=1,
                                       temperature=10000.0):
    h, w, d = grid_size
    gh = jnp.arange(h, dtype=jnp.float32)
    gw = jnp.arange(w, dtype=jnp.float32)
    gd = jnp.arange(d, dtype=jnp.float32)
    GH, GW, GD = jnp.meshgrid(gh, gw, gd, indexing="ij")   # torch.meshgrid default = 'ij'
    assert embed_dim % 6 == 0
    pos_dim = embed_dim // 6
    omega = jnp.arange(pos_dim, dtype=jnp.float32) / pos_dim
    omega = 1.0 / temperature ** omega
    out_h = GH.reshape(-1)[:, None] * omega[None, :]
    out_w = GW.reshape(-1)[:, None] * omega[None, :]
    out_d = GD.reshape(-1)[:, None] * omega[None, :]
    pe = jnp.concatenate([jnp.sin(out_h), jnp.cos(out_h),
                          jnp.sin(out_w), jnp.cos(out_w),
                          jnp.sin(out_d), jnp.cos(out_d)], axis=1)[None, :, :]
    assert num_tokens in (0, 1)
    if num_tokens == 1:
        pe = jnp.concatenate([jnp.zeros((1, 1, embed_dim), jnp.float32), pe], axis=1)
    return pe   # (1, 1 + h*w*d, embed_dim)


# ----------------------------------------------------------------------------
# Pallas kernel factory: fused layer-token add + unshuffle scatter + pos add
# ----------------------------------------------------------------------------
def _make_concat_unshuffle_kernel(split_sizes, num_layers):
    offsets = [0]
    for s in split_sizes[:-1]:
        offsets.append(offsets[-1] + s)

    def kernel(idx_ref, *refs):
        # idx_ref : (B, L) int32 in SMEM (scalar prefetch) -- for source row k of
        #           the concatenated sequence, idx_ref[b, k] is its destination
        #           (= original token index) in the unshuffled output.
        # refs    : x_0..x_{n-1} (1, Lv_i, C), tok (num_layers, C), pos (L, C),
        #           out (1, L, C)
        x_refs = refs[:num_layers]
        tok_ref = refs[num_layers]
        pos_ref = refs[num_layers + 1]
        out_ref = refs[num_layers + 2]

        b = pl.program_id(0)

        for i in range(num_layers):
            off = offsets[i]
            lv = split_sizes[i]
            x_ref = x_refs[i]
            tok_i = tok_ref[i:i + 1, :]                       # (1, C), hoisted per layer

            # Sequential reads of x_i rows, dynamic-offset scatter stores into out.
            # Every output row is written exactly once per batch element (the
            # indices form a permutation of [0, L)), so no init pass is needed.
            def row_body(r, carry, x_ref=x_ref, tok_i=tok_i, off=off):
                dst = idx_ref[b, off + r]                     # SMEM scalar read
                row = (x_ref[:, pl.ds(r, 1), :]               # (1, 1, C)
                       + tok_i[None]
                       + pos_ref[pl.ds(dst, 1), :][None])
                out_ref[:, pl.ds(dst, 1), :] = row.astype(out_ref.dtype)
                return carry

            jax.lax.fori_loop(0, lv, row_body, 0)

    return kernel


def concat_unshuffle_forward(x_list, policy_list, layer_tokens, pos_embed):
    """Pallas implementation of ConcatUnshuffle.forward."""
    B, _, C = x_list[0].shape
    num_layers = len(x_list)
    split_sizes = tuple(int(x.shape[1]) for x in x_list)
    L = int(sum(split_sizes))

    # ---- glue: torch.nonzero / argsort index bookkeeping (host side; shapes are
    #      data-dependent, no static-shape Pallas equivalent) -------------------
    # shuffled_idx[b, k] = original token index of source row k of concat(x_list).
    # out[b, shuffled_idx[b, k]] = concat(x)[b, k]  <=>  gather by argsort(shuffled_idx),
    # so the scatter destinations ARE shuffled_idx (no argsort needed on device).
    shuffled = []
    for policy in policy_list:
        p = np.asarray(policy)
        Lv = int(p.sum(axis=1)[0])
        vis = np.stack([np.nonzero(p[b])[0] for b in range(B)], axis=0)   # (B, Lv)
        assert vis.shape[1] == Lv
        shuffled.append(vis)
    shuffled_idx = np.concatenate(shuffled, axis=1).astype(np.int32)      # (B, L)
    assert shuffled_idx.shape[1] == L, "unmatched length of x and policy"
    dst_idx = jnp.asarray(shuffled_idx)                                   # (B, L) int32

    # stacked layer tokens (num_layers, C); positional embedding (L, C)
    tok = jnp.concatenate([jnp.reshape(layer_tokens[i], (1, C))
                           for i in range(num_layers)], axis=0)
    pos = pos_embed[0]                                                    # (L, C)

    kernel = _make_concat_unshuffle_kernel(split_sizes, num_layers)

    in_specs = []
    for lv in split_sizes:
        in_specs.append(pl.BlockSpec((1, lv, C), lambda b, idx: (b, 0, 0)))   # x_i
    in_specs.append(pl.BlockSpec((num_layers, C), lambda b, idx: (0, 0)))     # layer tokens
    in_specs.append(pl.BlockSpec((L, C), lambda b, idx: (0, 0)))              # pos embed

    grid_spec = pltpu.PrefetchScalarGridSpec(
        num_scalar_prefetch=1,             # dst_idx -> SMEM, passed to index_maps
        grid=(B,),
        in_specs=in_specs,
        out_specs=pl.BlockSpec((1, L, C), lambda b, idx: (b, 0, 0)),
    )

    # Memory-bound op: bytes = x in + out + pos + tok + indices; flops = 2 adds/elem.
    bytes_accessed = 4 * (B * L * C            # x inputs
                          + B * L * C          # output
                          + L * C              # pos embed
                          + num_layers * C     # layer tokens
                          + B * L)             # indices
    cost = pl.CostEstimate(flops=2 * B * L * C, transcendentals=0,
                           bytes_accessed=bytes_accessed)

    out = pl.pallas_call(
        kernel,
        out_shape=jax.ShapeDtypeStruct((B, L, C), jnp.float32),
        grid_spec=grid_spec,
        compiler_params=pltpu.CompilerParams(
            dimension_semantics=("parallel",)),   # batch rows are independent
        cost_estimate=cost,
    )(dst_idx, *x_list, tok, pos)
    return out


# ----------------------------------------------------------------------------
# Pure-JAX reference (for correctness check)
# ----------------------------------------------------------------------------
def reference_forward(x_list, policy_list, layer_tokens, pos_embed):
    B, _, C = x_list[0].shape
    toks = [jnp.broadcast_to(layer_tokens[i], x_list[i].shape)
            for i in range(len(x_list))]
    x = jnp.concatenate(x_list, axis=1) + jnp.concatenate(toks, axis=1)
    shuffled = []
    for policy in policy_list:
        p = np.asarray(policy)
        vis = np.stack([np.nonzero(p[b])[0] for b in range(B)], axis=0)
        shuffled.append(vis)
    shuffled_idx = np.concatenate(shuffled, axis=1)
    unshuffle_idx = np.argsort(shuffled_idx, axis=1)
    x = jnp.take_along_axis(x, jnp.asarray(unshuffle_idx)[:, :, None], axis=1)
    return x + pos_embed


# ----------------------------------------------------------------------------
# Main
# ----------------------------------------------------------------------------
if __name__ == "__main__":
    # Small shapes consistent with the module:
    #   grid_size=(2,2,2) -> 8 grid tokens + 1 cls token -> L = 9
    #   embed_dim=96 (divisible by 6), batch=2, num_layers=3
    B, embed_dim, grid_size, num_layers = 2, 96, (2, 2, 2), 3
    L = 1 + grid_size[0] * grid_size[1] * grid_size[2]
    split_sizes = [4, 3, 2]
    assert sum(split_sizes) == L and len(split_sizes) == num_layers

    key = jax.random.PRNGKey(0)
    k_tok, k_perm, k_x = jax.random.split(key, 3)

    # Parameters (deterministic, matching __init__ shapes).  Layer tokens are
    # initialized to small non-zero values to exercise the add path
    # (nn.Parameter(torch.zeros(...)) in the original init).
    layer_tokens = [
        0.02 * jax.random.normal(jax.random.fold_in(k_tok, i), (1, 1, embed_dim),
                                 dtype=jnp.float32)
        for i in range(num_layers)
    ]
    pos_embed = build_3d_sincos_position_embedding(grid_size, embed_dim, num_tokens=1)

    # Build per-batch policies partitioning the L token indices.
    policies_np = np.zeros((num_layers, B, L), dtype=np.float32)
    for b in range(B):
        perm = np.asarray(jax.random.permutation(jax.random.fold_in(k_perm, b), L))
        off = 0
        for i, sz in enumerate(split_sizes):
            policies_np[i, b, perm[off:off + sz]] = 1.0
            off += sz
    policy_list = [jnp.asarray(policies_np[i]) for i in range(num_layers)]

    # Visible tokens per layer: (B, Lv_i, C)
    x_list = [
        jax.random.normal(jax.random.fold_in(k_x, i), (B, split_sizes[i], embed_dim),
                          dtype=jnp.float32)
        for i in range(num_layers)
    ]

    out = concat_unshuffle_forward(x_list, policy_list, layer_tokens, pos_embed)
    out = jax.block_until_ready(out)

    ref = reference_forward(x_list, policy_list, layer_tokens, pos_embed)
    ref = jax.block_until_ready(ref)

    assert out.shape == (B, L, embed_dim)
    np.testing.assert_allclose(np.asarray(out), np.asarray(ref), rtol=1e-5, atol=1e-5)
    print("KERNEL_OK")
</pallas_src>

<mosaic_0001>
module attributes {stable_mosaic.version = 11 : i64} {
  func.func @kernel(%arg0: i32, %arg1: memref<2x9xi32, #tpu.memory_space<smem>>, %arg2: memref<1x4x96xf32, #tpu.memory_space<vmem>>, %arg3: memref<1x3x96xf32, #tpu.memory_space<vmem>>, %arg4: memref<1x2x96xf32, #tpu.memory_space<vmem>>, %arg5: memref<3x96xf32, #tpu.memory_space<vmem>>, %arg6: memref<9x96xf32, #tpu.memory_space<vmem>>, %arg7: memref<1x9x96xf32, #tpu.memory_space<vmem>>) attributes {dimension_semantics = [#tpu.dimension_semantics<parallel>], iteration_bounds = array<i64: 2>, scalar_prefetch = 1 : i64, scratch_operands = 0 : i64, tpu.core_type = #tpu.core_type<tc>, window_params = [{transform_indices = @transform_0, window_bounds = array<i64: 1, 4, 96>}, {transform_indices = @transform_1, window_bounds = array<i64: 1, 3, 96>}, {transform_indices = @transform_2, window_bounds = array<i64: 1, 2, 96>}, {pipeline_mode = #tpu.pipeline_mode<synchronous>, transform_indices = @transform_3, window_bounds = array<i64: 3, 96>}, {pipeline_mode = #tpu.pipeline_mode<synchronous>, transform_indices = @transform_4, window_bounds = array<i64: 9, 96>}, {transform_indices = @transform_5, window_bounds = array<i64: 1, 9, 96>}]} {
    %c0 = arith.constant 0 : index
    %c0_0 = arith.constant 0 : index
    %0 = vector.load %arg5[%c0, %c0_0] : memref<3x96xf32, #tpu.memory_space<vmem>>, vector<1x96xf32>
    %c0_i32 = arith.constant 0 : i32
    %c4_i32 = arith.constant 4 : i32
    %1 = arith.addi %c0_i32, %c4_i32 : i32
    %c1_i32 = arith.constant 1 : i32
    scf.for %arg8 = %c0_i32 to %1 step %c1_i32  : i32 {
      %c0_i32_10 = arith.constant 0 : i32
      %6 = arith.addi %c0_i32_10, %arg8 : i32
      %7 = arith.index_cast %arg0 : i32 to index
      %8 = arith.index_cast %6 : i32 to index
      %9 = memref.load %arg1[%7, %8] : memref<2x9xi32, #tpu.memory_space<smem>>
      %c0_11 = arith.constant 0 : index
      %10 = arith.index_cast %arg8 : i32 to index
      %c0_12 = arith.constant 0 : index
      %11 = vector.load %arg2[%c0_11, %10, %c0_12] : memref<1x4x96xf32, #tpu.memory_space<vmem>>, vector<1x1x96xf32>
      %12 = vector.shape_cast %0 : vector<1x96xf32> to vector<1x1x96xf32>
      %13 = arith.addf %11, %12 : vector<1x1x96xf32>
      %14 = arith.index_cast %9 : i32 to index
      %c0_13 = arith.constant 0 : index
      %15 = vector.load %arg6[%14, %c0_13] : memref<9x96xf32, #tpu.memory_space<vmem>>, vector<1x96xf32>
      %16 = vector.shape_cast %15 : vector<1x96xf32> to vector<1x1x96xf32>
      %17 = arith.addf %13, %16 : vector<1x1x96xf32>
      %c0_14 = arith.constant 0 : index
      %18 = arith.index_cast %9 : i32 to index
      %c0_15 = arith.constant 0 : index
      %19 = vector.load %arg7[%c0_14, %18, %c0_15] : memref<1x9x96xf32, #tpu.memory_space<vmem>>, vector<1x1x96xf32>
      tpu.vector_store %arg7[%c0_14, %18, %c0_15], %17 {strides = array<i32>} : memref<1x9x96xf32, #tpu.memory_space<vmem>>, vector<1x1x96xf32>,
    }
    %c4_i32_1 = arith.constant 4 : i32
    %c1 = arith.constant 1 : index
    %c0_2 = arith.constant 0 : index
    %2 = vector.load %arg5[%c1, %c0_2] : memref<3x96xf32, #tpu.memory_space<vmem>>, vector<1x96xf32>
    %c0_i32_3 = arith.constant 0 : i32
    %c3_i32 = arith.constant 3 : i32
    %3 = arith.addi %c0_i32_3, %c3_i32 : i32
    %c1_i32_4 = arith.constant 1 : i32
    scf.for %arg8 = %c0_i32_3 to %3 step %c1_i32_4  : i32 {
      %c4_i32_10 = arith.constant 4 : i32
      %6 = arith.addi %c4_i32_10, %arg8 : i32
      %7 = arith.index_cast %arg0 : i32 to index
      %8 = arith.index_cast %6 : i32 to index
      %9 = memref.load %arg1[%7, %8] : memref<2x9xi32, #tpu.memory_space<smem>>
      %c0_11 = arith.constant 0 : index
      %10 = arith.index_cast %arg8 : i32 to index
      %c0_12 = arith.constant 0 : index
      %11 = vector.load %arg3[%c0_11, %10, %c0_12] : memref<1x3x96xf32, #tpu.memory_space<vmem>>, vector<1x1x96xf32>
      %12 = vector.shape_cast %2 : vector<1x96xf32> to vector<1x1x96xf32>
      %13 = arith.addf %11, %12 : vector<1x1x96xf32>
      %14 = arith.index_cast %9 : i32 to index
      %c0_13 = arith.constant 0 : index
      %15 = vector.load %arg6[%14, %c0_13] : memref<9x96xf32, #tpu.memory_space<vmem>>, vector<1x96xf32>
      %16 = vector.shape_cast %15 : vector<1x96xf32> to vector<1x1x96xf32>
      %17 = arith.addf %13, %16 : vector<1x1x96xf32>
      %c0_14 = arith.constant 0 : index
      %18 = arith.index_cast %9 : i32 to index
      %c0_15 = arith.constant 0 : index
      %19 = vector.load %arg7[%c0_14, %18, %c0_15] : memref<1x9x96xf32, #tpu.memory_space<vmem>>, vector<1x1x96xf32>
      tpu.vector_store %arg7[%c0_14, %18, %c0_15], %17 {strides = array<i32>} : memref<1x9x96xf32, #tpu.memory_space<vmem>>, vector<1x1x96xf32>,
    }
    %c3_i32_5 = arith.constant 3 : i32
    %c2 = arith.constant 2 : index
    %c0_6 = arith.constant 0 : index
    %4 = vector.load %arg5[%c2, %c0_6] : memref<3x96xf32, #tpu.memory_space<vmem>>, vector<1x96xf32>
    %c0_i32_7 = arith.constant 0 : i32
    %c2_i32 = arith.constant 2 : i32
    %5 = arith.addi %c0_i32_7, %c2_i32 : i32
    %c1_i32_8 = arith.constant 1 : i32
    scf.for %arg8 = %c0_i32_7 to %5 step %c1_i32_8  : i32 {
      %c7_i32 = arith.constant 7 : i32
      %6 = arith.addi %c7_i32, %arg8 : i32
      %7 = arith.index_cast %arg0 : i32 to index
      %8 = arith.index_cast %6 : i32 to index
      %9 = memref.load %arg1[%7, %8] : memref<2x9xi32, #tpu.memory_space<smem>>
      %c0_10 = arith.constant 0 : index
      %10 = arith.index_cast %arg8 : i32 to index
      %c0_11 = arith.constant 0 : index
      %11 = vector.load %arg4[%c0_10, %10, %c0_11] : memref<1x2x96xf32, #tpu.memory_space<vmem>>, vector<1x1x96xf32>
      %12 = vector.shape_cast %4 : vector<1x96xf32> to vector<1x1x96xf32>
      %13 = arith.addf %11, %12 : vector<1x1x96xf32>
      %14 = arith.index_cast %9 : i32 to index
      %c0_12 = arith.constant 0 : index
      %15 = vector.load %arg6[%14, %c0_12] : memref<9x96xf32, #tpu.memory_space<vmem>>, vector<1x96xf32>
      %16 = vector.shape_cast %15 : vector<1x96xf32> to vector<1x1x96xf32>
      %17 = arith.addf %13, %16 : vector<1x1x96xf32>
      %c0_13 = arith.constant 0 : index
      %18 = arith.index_cast %9 : i32 to index
      %c0_14 = arith.constant 0 : index
      %19 = vector.load %arg7[%c0_13, %18, %c0_14] : memref<1x9x96xf32, #tpu.memory_space<vmem>>, vector<1x1x96xf32>
      tpu.vector_store %arg7[%c0_13, %18, %c0_14], %17 {strides = array<i32>} : memref<1x9x96xf32, #tpu.memory_space<vmem>>, vector<1x1x96xf32>,
    }
    %c2_i32_9 = arith.constant 2 : i32
    return
  }
  func.func @transform_0(%arg0: i32, %arg1: memref<2x9xi32, #tpu.memory_space<smem>>) -> (i32, i32, i32) {
    %c0_i32 = arith.constant 0 : i32
    %c0_i32_0 = arith.constant 0 : i32
    %c0_i32_1 = arith.constant 0 : i32
    return %arg0, %c0_i32, %c0_i32_0 : i32, i32, i32
  }
  func.func @transform_1(%arg0: i32, %arg1: memref<2x9xi32, #tpu.memory_space<smem>>) -> (i32, i32, i32) {
    %c0_i32 = arith.constant 0 : i32
    %c0_i32_0 = arith.constant 0 : i32
    %c0_i32_1 = arith.constant 0 : i32
    return %arg0, %c0_i32, %c0_i32_0 : i32, i32, i32
  }
  func.func @transform_2(%arg0: i32, %arg1: memref<2x9xi32, #tpu.memory_space<smem>>) -> (i32, i32, i32) {
    %c0_i32 = arith.constant 0 : i32
    %c0_i32_0 = arith.constant 0 : i32
    %c0_i32_1 = arith.constant 0 : i32
    return %arg0, %c0_i32, %c0_i32_0 : i32, i32, i32
  }
  func.func @transform_3(%arg0: i32, %arg1: memref<2x9xi32, #tpu.memory_space<smem>>) -> (i32, i32) {
    %c0_i32 = arith.constant 0 : i32
    %c0_i32_0 = arith.constant 0 : i32
    %c0_i32_1 = arith.constant 0 : i32
    return %c0_i32, %c0_i32_0 : i32, i32
  }
  func.func @transform_4(%arg0: i32, %arg1: memref<2x9xi32, #tpu.memory_space<smem>>) -> (i32, i32) {
    %c0_i32 = arith.constant 0 : i32
    %c0_i32_0 = arith.constant 0 : i32
    %c0_i32_1 = arith.constant 0 : i32
    return %c0_i32, %c0_i32_0 : i32, i32
  }
  func.func @transform_5(%arg0: i32, %arg1: memref<2x9xi32, #tpu.memory_space<smem>>) -> (i32, i32, i32) {
    %c0_i32 = arith.constant 0 : i32
    %c0_i32_0 = arith.constant 0 : i32
    %c0_i32_1 = arith.constant 0 : i32
    return %arg0, %c0_i32, %c0_i32_0 : i32, i32, i32
  }
}

</mosaic_0001>

<llo_original>
// kernel: tpu_custom_call.1
$region0: #{tpu_custom_call.1}
  #allocation0 [shape = 'u32[]', space=smem, size = 0x4, offset = 0x4, fixed_abs, tag = 'smem constant byte address 0x4 - core index']
  #allocation1 [shape = 'u32[144,128]{1,0:T(1,128)}', space=vmem, size = 0x12000, scoped, tag = 'internal scratch']
  #allocation2 [shape = 's32[1]{0}', space=sflag, size = 0x4, scoped, tag = 'scoped memory for tpu_custom_call.1']
  #allocation3 [shape = 'u8[1024]{0}', space=smem, size = 0x400, scoped, tag = 'prefetched SMEM operand 0']
  %s0 = inlined_call_operand.hbm [shape: s32[2,9], index: 0, kind: input, shape index: {}]
  %s1 = inlined_call_operand.vmem [shape: f32[2,4,96], index: 1, kind: input, shape index: {}]
  %s2 = inlined_call_operand.vmem [shape: f32[2,3,96], index: 2, kind: input, shape index: {}]
  %s3 = inlined_call_operand.vmem [shape: f32[2,2,96], index: 3, kind: input, shape index: {}]
  %s4 = inlined_call_operand.vmem [shape: f32[3,96], index: 4, kind: input, shape index: {}]
  %s5 = inlined_call_operand.vmem [shape: f32[9,96], index: 5, kind: input, shape index: {}]
  %s6 = inlined_call_operand.vmem [shape: f32[2,9,96], index: 6, kind: output, shape index: {}]
  %s7 = sld [smem:[#allocation0]]
  $region74: #{tpu_custom_call.1} parent=0
    _
  %s9 = ssub.s32 1, %s7
  %s10 = scalar_select 0, %s9, %s7
  %12 = dma.hbm_to_smem %s0, 32, [#allocation3], [#allocation2]
  %13 = dma.done [#allocation2], 32
  %14 = sfence
  loop: start=0, step=1, limit=4
  $region2: #{tpu_custom_call.1} parent=0 // loop_pre_header
    _
  $region3: #{tpu_custom_call.1} parent=0 // loop_header
    %s16 = sphi 0, %s20
    %p17 = scmp.ge.s32.totalorder %s16, 4
    %s26 = sphi 0, %s28
    %s29 = sphi 0, %s26
    %s30 = sphi 0, %s29
    %s46 = sphi 0, %s30
    %s52 = sphi 0, %s54
    %s55 = sphi 0, %s52
    %s56 = sphi 0, %s55
    %s72 = sphi 0, %s56
    %s78 = sphi 0, %s80
    %s81 = sphi 0, %s78
    %s82 = sphi 0, %s81
    %s98 = sphi 0, %s82
    %s102 = sphi 0, %s102
    %s104 = sphi 0, %s102
    %s105 = sphi 0, %s104
    %s119 = sphi 0, %s105
    %s123 = sphi 0, %s123
    %s125 = sphi 0, %s123
    %s126 = sphi 0, %s125
    %s140 = sphi 0, %s126
    %s146 = sphi 0, %s148
    %s149 = sphi 0, %s146
    %s150 = sphi 0, %s149
    %s166 = sphi 0, %s150
  $region4: #{tpu_custom_call.1} parent=0 // loop_header_branch
    %19 = sbr.rel (%p17) target = $region8
  $region5: #{tpu_custom_call.1} parent=0 // loop_body
    %s21 = ssub.s32 %s16, 1
    %s22 = ssub.s32 %s16, 2
    %s23 = sadd.s32 %s16, 1
    %s24 = ssub.s32 %s16, %s23
    %p25 = scmp.eq.s32.totalorder %s24, 0
    %s27 = sadd.s32 %s26, 1
    %s28 = scalar_select %p25, %s26, %s27
    %p31 = pneg %p25
    %p32 = scmp.eq.s32.totalorder %s16, 1
    %p33 = por %p31, %p32
    %p34 = scmp.ne.s32.totalorder %s26, %s29
    %p35 = scmp.eq.s32.totalorder %s16, 0
    %p36 = por %p34, %p35
    %p37 = scmp.ne.s32.totalorder %s26, %s29
    %p38 = scmp.eq.s32.totalorder %s21, 1
    %p39 = por %p37, %p38
    %p40 = scmp.ne.s32.totalorder %s29, %s30
    %p41 = scmp.eq.s32.totalorder %s21, 0
    %p42 = por %p40, %p41
    %p43 = scmp.ne.s32.totalorder %s29, %s30
    %p44 = scmp.eq.s32.totalorder %s22, 1
    %p45 = por %p43, %p44
    %p47 = scmp.ne.s32.totalorder %s30, %s46
    %p48 = scmp.eq.s32.totalorder %s22, 0
    %p49 = por %p47, %p48
    %s50 = ssub.s32 %s16, %s23
    %p51 = scmp.eq.s32.totalorder %s50, 0
    %s53 = sadd.s32 %s52, 1
    %s54 = scalar_select %p51, %s52, %s53
    %p57 = pneg %p51
    %p58 = scmp.eq.s32.totalorder %s16, 1
    %p59 = por %p57, %p58
    %p60 = scmp.ne.s32.totalorder %s52, %s55
    %p61 = scmp.eq.s32.totalorder %s16, 0
    %p62 = por %p60, %p61
    %p63 = scmp.ne.s32.totalorder %s52, %s55
    %p64 = scmp.eq.s32.totalorder %s21, 1
    %p65 = por %p63, %p64
    %p66 = scmp.ne.s32.totalorder %s55, %s56
    %p67 = scmp.eq.s32.totalorder %s21, 0
    %p68 = por %p66, %p67
    %p69 = scmp.ne.s32.totalorder %s55, %s56
    %p70 = scmp.eq.s32.totalorder %s22, 1
    %p71 = por %p69, %p70
    %p73 = scmp.ne.s32.totalorder %s56, %s72
    %p74 = scmp.eq.s32.totalorder %s22, 0
    %p75 = por %p73, %p74
    %s76 = ssub.s32 %s16, %s23
    %p77 = scmp.eq.s32.totalorder %s76, 0
    %s79 = sadd.s32 %s78, 1
    %s80 = scalar_select %p77, %s78, %s79
    %p83 = pneg %p77
    %p84 = scmp.eq.s32.totalorder %s16, 1
    %p85 = por %p83, %p84
    %p86 = scmp.ne.s32.totalorder %s78, %s81
    %p87 = scmp.eq.s32.totalorder %s16, 0
    %p88 = por %p86, %p87
    %p89 = scmp.ne.s32.totalorder %s78, %s81
    %p90 = scmp.eq.s32.totalorder %s21, 1
    %p91 = por %p89, %p90
    %p92 = scmp.ne.s32.totalorder %s81, %s82
    %p93 = scmp.eq.s32.totalorder %s21, 0
    %p94 = por %p92, %p93
    %p95 = scmp.ne.s32.totalorder %s81, %s82
    %p96 = scmp.eq.s32.totalorder %s22, 1
    %p97 = por %p95, %p96
    %p99 = scmp.ne.s32.totalorder %s82, %s98
    %p100 = scmp.eq.s32.totalorder %s22, 0
    %p101 = por %p99, %p100
    %s103 = sadd.s32 %s102, 1
    %p106 = scmp.eq.s32.totalorder %s16, 1
    %p107 = scmp.ne.s32.totalorder %s102, %s104
    %p108 = scmp.eq.s32.totalorder %s16, 0
    %p109 = por %p107, %p108
    %p110 = scmp.ne.s32.totalorder %s102, %s104
    %p111 = scmp.eq.s32.totalorder %s21, 1
    %p112 = por %p110, %p111
    %p113 = scmp.ne.s32.totalorder %s104, %s105
    %p114 = scmp.eq.s32.totalorder %s21, 0
    %p115 = por %p113, %p114
    %p116 = scmp.ne.s32.totalorder %s104, %s105
    %p117 = scmp.eq.s32.totalorder %s22, 1
    %p118 = por %p116, %p117
    %p120 = scmp.ne.s32.totalorder %s105, %s119
    %p121 = scmp.eq.s32.totalorder %s22, 0
    %p122 = por %p120, %p121
    %s124 = sadd.s32 %s123, 1
    %p127 = scmp.eq.s32.totalorder %s16, 1
    %p128 = scmp.ne.s32.totalorder %s123, %s125
    %p129 = scmp.eq.s32.totalorder %s16, 0
    %p130 = por %p128, %p129
    %p131 = scmp.ne.s32.totalorder %s123, %s125
    %p132 = scmp.eq.s32.totalorder %s21, 1
    %p133 = por %p131, %p132
    %p134 = scmp.ne.s32.totalorder %s125, %s126
    %p135 = scmp.eq.s32.totalorder %s21, 0
    %p136 = por %p134, %p135
    %p137 = scmp.ne.s32.totalorder %s125, %s126
    %p138 = scmp.eq.s32.totalorder %s22, 1
    %p139 = por %p137, %p138
    %p141 = scmp.ne.s32.totalorder %s126, %s140
    %p142 = scmp.eq.s32.totalorder %s22, 0
    %p143 = por %p141, %p142
    %s144 = ssub.s32 %s16, %s23
    %p145 = scmp.eq.s32.totalorder %s144, 0
    %s147 = sadd.s32 %s146, 1
    %s148 = scalar_select %p145, %s146, %s147
    %p151 = pneg %p145
    %p152 = scmp.eq.s32.totalorder %s16, 1
    %p153 = por %p151, %p152
    %p154 = scmp.ne.s32.totalorder %s146, %s149
    %p155 = scmp.eq.s32.totalorder %s16, 0
    %p156 = por %p154, %p155
    %p157 = scmp.ne.s32.totalorder %s146, %s149
    %p158 = scmp.eq.s32.totalorder %s21, 1
    %p159 = por %p157, %p158
    %p160 = scmp.ne.s32.totalorder %s149, %s150
    %p161 = scmp.eq.s32.totalorder %s21, 0
    %p162 = por %p160, %p161
    %p163 = scmp.ne.s32.totalorder %s149, %s150
    %p164 = scmp.eq.s32.totalorder %s22, 1
    %p165 = por %p163, %p164
    %p167 = scmp.ne.s32.totalorder %s150, %s166
    %p168 = scmp.eq.s32.totalorder %s22, 0
    %p169 = por %p167, %p168
    %p170 = scmp.le.s32.totalorder 1, %s16
    %p171 = scmp.lt.s32.totalorder %s16, 3
    %p172 = pnand %p170, %p171
    %p173 = pneg %p172
    // Predicated region
    $region9: #{tpu_custom_call.1} parent=5 // pred_check
      _
    $region10: #{tpu_custom_call.1} parent=5 // pred_check_branch
      %175 = sbr.rel (%p172) target = $region12
    $region11: #{tpu_custom_call.1} parent=5 // pred_region
      %s176 = ssub.s32 %s16, 1
      // Predicated region
      $region13: #{tpu_custom_call.1} parent=11 // pred_check
        %p177 = pneg %p115
      $region14: #{tpu_custom_call.1} parent=11 // pred_check_branch
        %179 = sbr.rel (%p177) target = $region16
      $region15: #{tpu_custom_call.1} parent=11 // pred_region
        _
      $region16: #{tpu_custom_call.1} parent=11 // pred_fallthru
        _
      // Predicated region
      $region17: #{tpu_custom_call.1} parent=11 // pred_check
        %p180 = pneg %p136
      $region18: #{tpu_custom_call.1} parent=11 // pred_check_branch
        %182 = sbr.rel (%p180) target = $region20
      $region19: #{tpu_custom_call.1} parent=11 // pred_region
        _
      $region20: #{tpu_custom_call.1} parent=11 // pred_fallthru
        _
    $region12: #{tpu_custom_call.1} parent=5 // pred_fallthru
      _
    %p183 = scmp.lt.s32.totalorder %s16, 2
    // Predicated region
    $region21: #{tpu_custom_call.1} parent=5 // pred_check
      %p184 = pneg %p183
    $region22: #{tpu_custom_call.1} parent=5 // pred_check_branch
      %186 = sbr.rel (%p184) target = $region24
    $region23: #{tpu_custom_call.1} parent=5 // pred_region
      // Predicated region
      $region25: #{tpu_custom_call.1} parent=23 // pred_check
        %p187 = pneg %p36
      $region26: #{tpu_custom_call.1} parent=23 // pred_check_branch
        %189 = sbr.rel (%p187) target = $region28
      $region27: #{tpu_custom_call.1} parent=23 // pred_region
        %p190 = scmp.lt.s32.totalorder %s16, 1
        %s191 = scalar_select %p190, %s16, 1
        %s192 = smul.addr %s191, 4
        %s193 = scalar_lea.vmem %s1, %s192
      $region28: #{tpu_custom_call.1} parent=23 // pred_fallthru
        _
      // Predicated region
      $region29: #{tpu_custom_call.1} parent=23 // pred_check
        %p194 = pneg %p62
      $region30: #{tpu_custom_call.1} parent=23 // pred_check_branch
        %196 = sbr.rel (%p194) target = $region32
      $region31: #{tpu_custom_call.1} parent=23 // pred_region
        %p197 = scmp.lt.s32.totalorder %s16, 1
        %s198 = scalar_select %p197, %s16, 1
        %s199 = smul.addr %s198, 4
        %s200 = scalar_lea.vmem %s2, %s199
      $region32: #{tpu_custom_call.1} parent=23 // pred_fallthru
        _
      // Predicated region
      $region33: #{tpu_custom_call.1} parent=23 // pred_check
        %p201 = pneg %p88
      $region34: #{tpu_custom_call.1} parent=23 // pred_check_branch
        %203 = sbr.rel (%p201) target = $region36
      $region35: #{tpu_custom_call.1} parent=23 // pred_region
        %p204 = scmp.lt.s32.totalorder %s16, 1
        %s205 = scalar_select %p204, %s16, 1
        %s206 = smul.addr %s205, 2
        %s207 = scalar_lea.vmem %s3, %s206
      $region36: #{tpu_custom_call.1} parent=23 // pred_fallthru
        _
    $region24: #{tpu_custom_call.1} parent=5 // pred_fallthru
      _
    %p208 = scmp.le.s32.totalorder 1, %s16
    %p209 = scmp.lt.s32.totalorder %s16, 3
    %p210 = pnand %p208, %p209
    %p211 = pneg %p210
    // Predicated region
    $region37: #{tpu_custom_call.1} parent=5 // pred_check
      _
    $region38: #{tpu_custom_call.1} parent=5 // pred_check_branch
      %213 = sbr.rel (%p210) target = $region40
    $region39: #{tpu_custom_call.1} parent=5 // pred_region
      %s214 = ssub.s32 %s16, 1
      %p215 = scmp.lt.s32.totalorder %s21, 1
      %s216 = scalar_select %p215, %s21, 1
      %s217 = smul.addr %s216, 4
      %s218 = scalar_lea.vmem %s1, %s217
      %p219 = pneg %p42
      %p220 = pneg %p39
      %p221 = scmp.lt.s32.totalorder %s21, 1
      %s222 = scalar_select %p221, %s21, 1
      %s223 = smul.addr %s222, 4
      %s224 = scalar_lea.vmem %s2, %s223
      %p225 = pneg %p68
      %p226 = pneg %p65
      %p227 = scmp.lt.s32.totalorder %s21, 1
      %s228 = scalar_select %p227, %s21, 1
      %s229 = smul.addr %s228, 2
      %s230 = scalar_lea.vmem %s3, %s229
      %p231 = pneg %p94
      %p232 = pneg %p91
      %p233 = pneg %p115
      %p234 = pneg %p112
      %p235 = pneg %p136
      %p236 = pneg %p133
      %p237 = pneg %p162
      %p238 = pneg %p159
      %p239 = scmp.lt.s32.totalorder %s21, 1
      %s240 = scalar_select %p239, %s21, 1
      %s241 = smul.addr %s240, 2
      %s242 = smul.addr %s241, 8
      %s243 = scalar_lea.vmem %s6, %s242
      %p244 = scmp.lt.s32.totalorder %s21, 1
      %s245 = scalar_select %p244, %s21, 1
      %s246 = smul.addr %s245, 4
      %s247 = scalar_lea.vmem %s1, %s246
      %p248 = scmp.lt.s32.totalorder %s21, 1
      %s249 = scalar_select %p248, %s21, 1
      %s250 = smul.addr %s249, 4
      %s251 = scalar_lea.vmem %s2, %s250
      %p252 = scmp.lt.s32.totalorder %s21, 1
      %s253 = scalar_select %p252, %s21, 1
      %s254 = smul.addr %s253, 2
      %s255 = scalar_lea.vmem %s3, %s254
      %p256 = scmp.lt.s32.totalorder %s21, 1
      %s257 = scalar_select %p256, %s21, 1
      %s258 = smul.addr %s257, 2
      %s259 = smul.addr %s258, 8
      %s260 = scalar_lea.vmem %s6, %s259
      %v261 = vld [vmem:[%s4] sm:$0x1]
      loop: start=0, step=1, limit=4
      $region41: #{tpu_custom_call.1} parent=39 // loop_pre_header
        _
      $region42: #{tpu_custom_call.1} parent=39 // loop_header
        %s263 = sphi 0, %s267
        %p264 = scmp.ge.s32.totalorder %s263, 4
      $region43: #{tpu_custom_call.1} parent=39 // loop_header_branch
        %266 = sbr.rel (%p264) target = $region47
      $region44: #{tpu_custom_call.1} parent=39 // loop_body
        %s268 = sshra.s32 %s263, 7
        %s269 = sand.u32 %s263, 127
        %s270 = sadd.s32 %s268, %s21
        %s271 = smul.u32 %s270, 128
        %s272 = sshra.s32 %s263, 7
        %s273 = sand.u32 %s263, 127
        %s274 = sadd.s32 %s271, %s273
        %s275 = sld [smem:[#allocation3 + %s274]]
        %s276 = scalar_lea.vmem %s247, %s263
        %v277 = vld [vmem:[%s276] sm:$0x1]
        %v278 = vadd.f32 %v277, %v261
        %s279 = scalar_lea.vmem %s5, %s275
        %v280 = vld [vmem:[%s279] sm:$0x1]
        %v281 = vadd.f32 %v278, %v280
        %s282 = scalar_lea.vmem %s260, %s275
        %vm283 = vcmask 778240
        %284 = vst.msk [vmem:[%s282] sm:$0x1] %vm283, %v281
      $region45: #{tpu_custom_call.1} parent=39 // loop_footer
        %s267 = sadd.s32 1, %s263
      $region46: #{tpu_custom_call.1} parent=39 // loop_footer_branch
        %262 = sbr.rel target = $region42
      $region47: #{tpu_custom_call.1} parent=39 // loop_exit
        _
      %v285 = vld [vmem:[%s4 + $0x1] sm:$0x1]
      loop: start=0, step=1, limit=3
      $region48: #{tpu_custom_call.1} parent=39 // loop_pre_header
        _
      $region49: #{tpu_custom_call.1} parent=39 // loop_header
        %s287 = sphi 0, %s291
        %p288 = scmp.ge.s32.totalorder %s287, 3
      $region50: #{tpu_custom_call.1} parent=39 // loop_header_branch
        %290 = sbr.rel (%p288) target = $region54
      $region51: #{tpu_custom_call.1} parent=39 // loop_body
        %s292 = sadd.s32 %s287, 4
        %s293 = sshra.s32 %s292, 7
        %s294 = sand.u32 %s292, 127
        %s295 = sadd.s32 %s293, %s21
        %s296 = smul.u32 %s295, 128
        %s297 = sshra.s32 %s292, 7
        %s298 = sand.u32 %s292, 127
        %s299 = sadd.s32 %s296, %s298
        %s300 = sld [smem:[#allocation3 + %s299]]
        %s301 = scalar_lea.vmem %s251, %s287
        %v302 = vld [vmem:[%s301] sm:$0x1]
        %v303 = vadd.f32 %v302, %v285
        %s304 = scalar_lea.vmem %s5, %s300
        %v305 = vld [vmem:[%s304] sm:$0x1]
        %v306 = vadd.f32 %v303, %v305
        %s307 = scalar_lea.vmem %s260, %s300
        %vm308 = vcmask 778240
        %309 = vst.msk [vmem:[%s307] sm:$0x1] %vm308, %v306
      $region52: #{tpu_custom_call.1} parent=39 // loop_footer
        %s291 = sadd.s32 1, %s287
      $region53: #{tpu_custom_call.1} parent=39 // loop_footer_branch
        %286 = sbr.rel target = $region49
      $region54: #{tpu_custom_call.1} parent=39 // loop_exit
        _
      %v310 = vld [vmem:[%s4 + $0x2] sm:$0x1]
      loop: start=0, step=1, limit=2
      $region55: #{tpu_custom_call.1} parent=39 // loop_pre_header
        _
      $region56: #{tpu_custom_call.1} parent=39 // loop_header
        %s312 = sphi 0, %s316
        %p313 = scmp.ge.s32.totalorder %s312, 2
      $region57: #{tpu_custom_call.1} parent=39 // loop_header_branch
        %315 = sbr.rel (%p313) target = $region61
      $region58: #{tpu_custom_call.1} parent=39 // loop_body
        %s317 = sadd.s32 %s312, 7
        %s318 = sshra.s32 %s317, 7
        %s319 = sand.u32 %s317, 127
        %s320 = sadd.s32 %s318, %s21
        %s321 = smul.u32 %s320, 128
        %s322 = sshra.s32 %s317, 7
        %s323 = sand.u32 %s317, 127
        %s324 = sadd.s32 %s321, %s323
        %s325 = sld [smem:[#allocation3 + %s324]]
        %s326 = scalar_lea.vmem %s255, %s312
        %v327 = vld [vmem:[%s326] sm:$0x1]
        %v328 = vadd.f32 %v327, %v310
        %s329 = scalar_lea.vmem %s5, %s325
        %v330 = vld [vmem:[%s329] sm:$0x1]
        %v331 = vadd.f32 %v328, %v330
        %s332 = scalar_lea.vmem %s260, %s325
        %vm333 = vcmask 778240
        %334 = vst.msk [vmem:[%s332] sm:$0x1] %vm333, %v331
      $region59: #{tpu_custom_call.1} parent=39 // loop_footer
        %s316 = sadd.s32 1, %s312
      $region60: #{tpu_custom_call.1} parent=39 // loop_footer_branch
        %311 = sbr.rel target = $region56
      $region61: #{tpu_custom_call.1} parent=39 // loop_exit
        _
      %p335 = scmp.lt.s32.totalorder %s21, 1
      %s336 = scalar_select %p335, %s21, 1
      %s337 = smul.addr %s336, 2
      %s338 = smul.addr %s337, 8
      %s339 = scalar_lea.vmem %s6, %s338
      // Predicated region
      $region62: #{tpu_custom_call.1} parent=39 // pred_check
        %p340 = pneg %p159
      $region63: #{tpu_custom_call.1} parent=39 // pred_check_branch
        %342 = sbr.rel (%p340) target = $region65
      $region64: #{tpu_custom_call.1} parent=39 // pred_region
        _
      $region65: #{tpu_custom_call.1} parent=39 // pred_fallthru
        _
    $region40: #{tpu_custom_call.1} parent=5 // pred_fallthru
      _
    %p343 = scmp.le.s32.totalorder 2, %s16
    // Predicated region
    $region66: #{tpu_custom_call.1} parent=5 // pred_check
      %p344 = pneg %p343
    $region67: #{tpu_custom_call.1} parent=5 // pred_check_branch
      %346 = sbr.rel (%p344) target = $region69
    $region68: #{tpu_custom_call.1} parent=5 // pred_region
      %s347 = ssub.s32 %s16, 2
      // Predicated region
      $region70: #{tpu_custom_call.1} parent=68 // pred_check
        %p348 = pneg %p165
      $region71: #{tpu_custom_call.1} parent=68 // pred_check_branch
        %350 = sbr.rel (%p348) target = $region73
      $region72: #{tpu_custom_call.1} parent=68 // pred_region
        %p351 = scmp.lt.s32.totalorder %s22, 1
        %s352 = scalar_select %p351, %s22, 1
        %s353 = smul.addr %s352, 2
        %s354 = smul.addr %s353, 8
        %s355 = scalar_lea.vmem %s6, %s354
      $region73: #{tpu_custom_call.1} parent=68 // pred_fallthru
        _
    $region69: #{tpu_custom_call.1} parent=5 // pred_fallthru
      _
  $region6: #{tpu_custom_call.1} parent=0 // loop_footer
    %s20 = sadd.s32 1, %s16
  $region7: #{tpu_custom_call.1} parent=0 // loop_footer_branch
    %15 = sbr.rel target = $region3
  $region8: #{tpu_custom_call.1} parent=0 // loop_exit
    _

</llo_original>
